<compile_context>
chip_gen: v7x
topology: tpu7x:2x2x1
jax: 0.10.0
libtpu: 0.0.40
codegen_flags: <defaults>
</compile_context>

<pallas_src>
import math
from itertools import combinations

import jax
import jax.numpy as jnp
from jax import lax
from jax.experimental import pallas as pl
from jax.experimental.pallas import tpu as pltpu

KEYS = ('t1', 't2', 't3', 't4', 't5')
_PAIR_IDX = list(combinations(range(len(KEYS)), 2))     # 10 pairs of key indices
_LANE = 128
_LATENT_BLOCK_ROWS = 1024       # batch tile for the fused latent kernel

_MSE_CONFIG_CACHE = None


def _mse_config():
    """(block_rows, num_slices, vmem_limit_bytes), tuned per TPU generation."""
    global _MSE_CONFIG_CACHE
    if _MSE_CONFIG_CACHE is None:
        block_rows, num_slices, vmem_limit = 2048, 1, 48 << 20
        try:
            kind = jax.devices()[0].device_kind.lower()
        except Exception:       # unknown backend: keep safe defaults
            kind = ""
        if "v7" in kind:
            # 2 TensorCores/chip, 64 MiB VMEM per core: keep 1 MiB blocks and
            # split the reduction across both cores.
            num_slices = 2
        elif "v5" in kind or "v6" in kind:
            # single TensorCore, 128 MiB physical VMEM: 2 MiB blocks further
            # amortize the ~0.35 us per-step overhead.
            block_rows, vmem_limit = 4096, 64 << 20
        _MSE_CONFIG_CACHE = (block_rows, num_slices, vmem_limit)
    return _MSE_CONFIG_CACHE


# ----------------------------- MSE reduction -----------------------------

def _make_mse_kernel(n_pairs, block_rows, bps, num_slices, tail):
    """Sum of squared differences over all pairs, accumulated in VMEM; one
    SMEM scalar partial per slice."""

    def kernel(*refs):
        in_refs = refs[:2 * n_pairs]
        o_ref = refs[2 * n_pairs]          # (1, 1) SMEM per-slice partial
        acc_ref = refs[2 * n_pairs + 1]    # (block_rows, 128) VMEM accumulator
        i = pl.program_id(0)               # slice ("parallel") axis
        j = pl.program_id(1)               # reduction ("arbitrary") axis

        @pl.when(j == 0)
        def _init():
            acc_ref[...] = jnp.zeros_like(acc_ref)

        part = jnp.zeros((block_rows, _LANE), jnp.float32)
        for p in range(n_pairs):
            d = (in_refs[p][...].astype(jnp.float32)
                 - in_refs[n_pairs + p][...].astype(jnp.float32))
            part = part + d * d

        if tail:
            # Only the genuine last block overhangs the array; keep the mask
            # (iota + compare + select) off the common path.
            is_last = jnp.logical_and(i == num_slices - 1, j == bps - 1)

            @pl.when(is_last)
            def _acc_masked():
                rid = lax.broadcasted_iota(jnp.int32, (block_rows, _LANE), 0)
                acc_ref[...] += jnp.where(rid < tail, part, 0.0)

            @pl.when(jnp.logical_not(is_last))
            def _acc():
                acc_ref[...] += part
        else:
            acc_ref[...] += part

        @pl.when(j == bps - 1)
        def _finalize():
            o_ref[0, 0] = jnp.sum(acc_ref[...])

    return kernel


def mse_mean_pallas(recon_list, target_list):
    """(1/K) * sum_k mean((recon_k - target_k)^2); all K tensors share a shape,
    so this equals the global mean over squared differences."""
    n_pairs = len(recon_list)
    shape = recon_list[0].shape
    assert all(t.shape == shape for t in list(recon_list) + list(target_list)), \
        "all time-step tensors must share a shape"
    n_elem = math.prod(shape)
    lane_pad = (-n_elem) % _LANE

    def as_rows(x):
        xf = x.reshape(-1)                         # contiguous reshape: no copy
        if lane_pad:
            # TODO(synk): only hit when numel % 128 != 0; the zero pad keeps the
            # padded diff at 0 but costs one full read+write of the tensor.
            xf = jnp.pad(xf, (0, lane_pad))
        return xf.reshape(-1, _LANE)               # keep original dtype (bf16 ok)

    a_rows = [as_rows(x) for x in recon_list]
    b_rows = [as_rows(x) for x in target_list]
    rows = a_rows[0].shape[0]

    block_rows_cfg, num_slices_cfg, vmem_limit = _mse_config()
    block_rows = rows if rows <= block_rows_cfg else block_rows_cfg
    total_blocks = -(-rows // block_rows)
    # Split across the two v7x TensorCores only when the split is exact, so no
    # clamped dummy grid cell ever re-fetches a block from HBM.
    if total_blocks >= num_slices_cfg and total_blocks % num_slices_cfg == 0:
        num_slices = num_slices_cfg
    else:
        num_slices = 1
    bps = total_blocks // num_slices
    tail = rows % block_rows                       # 0 -> last block is full

    in_spec = pl.BlockSpec((block_rows, _LANE), lambda i, j: (i * bps + j, 0))
    partials = pl.pallas_call(
        _make_mse_kernel(n_pairs, block_rows, bps, num_slices, tail),
        out_shape=jax.ShapeDtypeStruct((num_slices, 1), jnp.float32),
        grid=(num_slices, bps),
        in_specs=[in_spec] * (2 * n_pairs),
        out_specs=pl.BlockSpec((1, 1), lambda i, j: (i, 0),
                               memory_space=pltpu.MemorySpace.SMEM),
        scratch_shapes=[pltpu.VMEM((block_rows, _LANE), jnp.float32)],
        compiler_params=pltpu.CompilerParams(
            dimension_semantics=("parallel", "arbitrary"),
            vmem_limit_bytes=vmem_limit),
    )(*a_rows, *b_rows)
    return jnp.sum(partials) / jnp.float32(n_pairs * n_elem)


# -------------------- fused KL + cosine-distance kernel --------------------

def _make_latent_kernel(row_block, n_keys):
    def kernel(*refs):
        mu_refs = refs[0:n_keys]
        lv_refs = refs[n_keys:2 * n_keys]
        z_refs = refs[2 * n_keys:3 * n_keys]
        kl_ref = refs[3 * n_keys]                  # (1, 1) SMEM scalar
        cd_ref = refs[3 * n_keys + 1]              # (row_block, 128) VMEM
        i = pl.program_id(0)

        @pl.when(i == 0)
        def _init():
            kl_ref[0, 0] = jnp.float32(0.0)

        # --- KL partial sum over this batch tile (zero-padded rows give 0) ---
        t = jnp.float32(0.0)
        for mu_r, lv_r in zip(mu_refs, lv_refs):
            mu = mu_r[...].astype(jnp.float32)
            lv = lv_r[...].astype(jnp.float32)
            t += jnp.sum(1.0 + lv - mu * mu - jnp.exp(lv))
        kl_ref[0, 0] += -0.5 * t

        # --- 10-pair cosine distances, lane-packed into one output tile ---
        zs = [z_r[...].astype(jnp.float32) for z_r in z_refs]
        # Per-key norms hoisted out of the pair loop; each norm clamped to eps
        # to match F.cosine_similarity semantics.
        norms = [jnp.maximum(jnp.sqrt(jnp.sum(z * z, axis=-1, keepdims=True)),
                             1e-8) for z in zs]
        lane = lax.broadcasted_iota(jnp.int32, (row_block, _LANE), 1)
        out = jnp.zeros((row_block, _LANE), jnp.float32)
        for p, (a, b) in enumerate(_PAIR_IDX):
            dot = jnp.sum(zs[a] * zs[b], axis=-1, keepdims=True)
            cd = 1.0 - jnp.abs(dot / (norms[a] * norms[b]))   # (row_block, 1)
            out = jnp.where(lane == p, cd, out)               # lane p <- pair p
        cd_ref[...] = out

    return kernel


def latent_losses_pallas(mu_list, lv_list, z_list):
    """One pallas_call that returns (KL sum over all keys/rows/dims,
    cosine distances of shape (10, B))."""
    B, D = mu_list[0].shape
    z_flat = [z.reshape(B, -1) for z in z_list]
    Dz = z_flat[0].shape[1]
    n_keys = len(KEYS)
    n_pairs = len(_PAIR_IDX)

    # Keep grid_b == 1 for realistic batch sizes, while bounding the per-step
    # VMEM footprint for very wide flattened embeddings.
    bytes_per_row = 4 * (2 * D + Dz) * n_keys
    cap = max(8, ((8 << 20) // max(bytes_per_row, 1)) // 8 * 8)
    limit = min(_LATENT_BLOCK_ROWS, cap)
    row_block = B if B <= limit else limit

    pad_b = (-B) % row_block
    if pad_b:
        padf = lambda x: jnp.pad(x, ((0, pad_b), (0, 0)))
        mu_list = [padf(m) for m in mu_list]
        lv_list = [padf(v) for v in lv_list]
        z_flat = [padf(z) for z in z_flat]
    b_pad = B + pad_b
    grid_b = b_pad // row_block

    kl, cd_raw = pl.pallas_call(
        _make_latent_kernel(row_block, n_keys),
        out_shape=(jax.ShapeDtypeStruct((1, 1), jnp.float32),
                   jax.ShapeDtypeStruct((b_pad, _LANE), jnp.float32)),
        grid=(grid_b,),
        in_specs=([pl.BlockSpec((row_block, D), lambda i: (i, 0))] * (2 * n_keys)
                  + [pl.BlockSpec((row_block, Dz), lambda i: (i, 0))] * n_keys),
        out_specs=(pl.BlockSpec((1, 1), lambda i: (0, 0),
                                memory_space=pltpu.MemorySpace.SMEM),
                   pl.BlockSpec((row_block, _LANE), lambda i: (i, 0))),
        compiler_params=pltpu.CompilerParams(
            dimension_semantics=("arbitrary",),
            vmem_limit_bytes=48 << 20),
    )(*mu_list, *lv_list, *z_flat)

    cd = jnp.transpose(cd_raw[:B, :n_pairs])       # (10, B)
    return kl[0, 0], cd


# ----------------------------- SetCriterion -----------------------------

class SetCriterionPallas:
    """JAX/Pallas port of the PyTorch SetCriterion (no learnable parameters)."""

    def __init__(self, losses):
        self.losses = losses

    def loss_recon_output(self, output, sample):
        # average of per-key MSE means; all keys share a shape so the global
        # mean over the 5 pairs equals the average of the per-key means.
        return mse_mean_pallas([output[k] for k in KEYS],
                               [sample[k] for k in KEYS])

    @staticmethod
    def _contrastive_from_cd(cd_mat, change, temperature):
        # TODO(synk): the PyTorch original iterates range(len(sample)) (number
        # of dict keys, not batch size) when building the changed/unchanged
        # index lists; here we use the intended per-batch-element semantics via
        # soft masks (no data-dependent shapes under jit).
        change = change.astype(jnp.float32)                  # (B,)
        changed_mask = change
        unchanged_mask = 1.0 - change
        n_changed = jnp.sum(changed_mask)
        n_unchanged = jnp.sum(unchanged_mask)
        safe_nc = jnp.maximum(n_changed, 1.0)
        safe_nu = jnp.maximum(n_unchanged, 1.0)

        cd = {(KEYS[a], KEYS[b]): cd_mat[p]
              for p, (a, b) in enumerate(_PAIR_IDX)}

        def get_cd(a, b):
            return cd[(a, b)] if (a, b) in cd else cd[(b, a)]

        keys4 = ['t1', 't2', 't3', 't4']
        contrastive = jnp.float32(0.0)
        for k in keys4:
            neg = jnp.exp(get_cd('t5', k) / temperature)
            others = [o for o in keys4 if o != k]
            pos = sum(jnp.exp(get_cd(k, o) / temperature) for o in others)
            per_sample = jnp.log(pos / neg)                   # (B,)
            # masked mean over changed rows == torch .mean() over the gathered
            # changed subset.
            contrastive = contrastive + jnp.sum(per_sample * changed_mask) / safe_nc
        # NOTE: the second division by the changed count intentionally matches
        # the PyTorch reference (`/= 4` then `/= len(indices_changed)`).
        contrastive = contrastive / 4.0 / safe_nc
        contrastive = jnp.where(n_changed > 0, contrastive, jnp.float32(0.0))

        consistency = jnp.float32(0.0)
        for p in range(len(_PAIR_IDX)):
            consistency = consistency + jnp.sum(cd_mat[p] * unchanged_mask) / safe_nu
        # same double normalization as the PyTorch reference.
        consistency = consistency / jnp.float32(len(_PAIR_IDX)) / safe_nu
        consistency = jnp.where(n_unchanged > 0, consistency, jnp.float32(0.0))
        return contrastive, consistency

    def __call__(self, recon_output, z_dict, mu_dict, log_var_dict, sample,
                 temperature):
        loss = {}
        if 'loss_recon_output' in self.losses:
            loss['loss_recon_output'] = self.loss_recon_output(recon_output, sample)

        need_kl = 'loss_kl_divergence' in self.losses
        need_z = 'loss_z' in self.losses
        if need_kl or need_z:
            # single fused pallas_call for everything that touches the latents
            kl_sum, cd = latent_losses_pallas(
                [mu_dict[k] for k in KEYS],
                [log_var_dict[k] for k in KEYS],
                [z_dict[k] for k in KEYS])
            if need_kl:
                B = mu_dict[KEYS[0]].shape[0]
                loss['loss_kl_divergence'] = kl_sum / jnp.float32(len(KEYS) * B)
            if need_z:
                contrastive, consistency = self._contrastive_from_cd(
                    cd, sample['change'], temperature)
                loss['loss_z_contrastive'] = contrastive
                loss['loss_z_consistency'] = consistency
        return loss


# ----------------------------- demo -----------------------------

if __name__ == "__main__":
    key = jax.random.PRNGKey(0)
    B, C, H, W, D = 2, 4, 16, 16, 32
    subkeys = iter(jax.random.split(key, 32))

    recon_output = {k: jax.random.normal(next(subkeys), (B, C, H, W), jnp.float32)
                    for k in KEYS}
    sample = {k: jax.random.normal(next(subkeys), (B, C, H, W), jnp.float32)
              for k in KEYS}
    sample['change'] = jnp.array([1, 0], dtype=jnp.int32)  # one changed, one unchanged
    z_dict = {k: jax.random.normal(next(subkeys), (B, D), jnp.float32) for k in KEYS}
    mu_dict = {k: 0.1 * jax.random.normal(next(subkeys), (B, D), jnp.float32)
               for k in KEYS}
    log_var_dict = {k: 0.1 * jax.random.normal(next(subkeys), (B, D), jnp.float32)
                    for k in KEYS}
    temperature = 0.5

    criterion = SetCriterionPallas(
        ['loss_recon_output', 'loss_kl_divergence', 'loss_z'])
    losses = criterion(recon_output, z_dict, mu_dict, log_var_dict, sample,
                       temperature)
    losses = jax.tree_util.tree_map(jax.block_until_ready, losses)

    # Lightweight correctness check against a pure-jnp reference.
    ref_recon = sum(jnp.mean((recon_output[k] - sample[k]) ** 2) for k in KEYS) / 5.0
    ref_kl = sum(jnp.mean(-0.5 * jnp.sum(1.0 + log_var_dict[k] - mu_dict[k] ** 2
                                         - jnp.exp(log_var_dict[k]), axis=1))
                 for k in KEYS) / 5.0
    assert bool(jnp.allclose(losses['loss_recon_output'], ref_recon,
                             rtol=1e-4, atol=1e-6)), "recon loss mismatch"
    assert bool(jnp.allclose(losses['loss_kl_divergence'], ref_kl,
                             rtol=1e-4, atol=1e-6)), "KL loss mismatch"
    assert bool(jnp.isfinite(losses['loss_z_contrastive']))
    assert bool(jnp.isfinite(losses['loss_z_consistency']))
    print("KERNEL_OK")
</pallas_src>

<mosaic_0001>
module attributes {stable_mosaic.version = 11 : i64} {
  func.func @kernel(%arg0: i32, %arg1: i32, %arg2: memref<16x128xf32, #tpu.memory_space<vmem>>, %arg3: memref<16x128xf32, #tpu.memory_space<vmem>>, %arg4: memref<16x128xf32, #tpu.memory_space<vmem>>, %arg5: memref<16x128xf32, #tpu.memory_space<vmem>>, %arg6: memref<16x128xf32, #tpu.memory_space<vmem>>, %arg7: memref<16x128xf32, #tpu.memory_space<vmem>>, %arg8: memref<16x128xf32, #tpu.memory_space<vmem>>, %arg9: memref<16x128xf32, #tpu.memory_space<vmem>>, %arg10: memref<16x128xf32, #tpu.memory_space<vmem>>, %arg11: memref<16x128xf32, #tpu.memory_space<vmem>>, %arg12: memref<1x1xf32, #tpu.memory_space<smem>>, %arg13: memref<16x128xf32, #tpu.memory_space<vmem>>) attributes {dimension_semantics = [#tpu.dimension_semantics<parallel>, #tpu.dimension_semantics<arbitrary>], iteration_bounds = array<i64: 1, 1>, scalar_prefetch = 0 : i64, scratch_operands = 1 : i64, tpu.core_type = #tpu.core_type<tc>, window_params = [{transform_indices = @transform_0, window_bounds = array<i64: 16, 128>}, {transform_indices = @transform_1, window_bounds = array<i64: 16, 128>}, {transform_indices = @transform_2, window_bounds = array<i64: 16, 128>}, {transform_indices = @transform_3, window_bounds = array<i64: 16, 128>}, {transform_indices = @transform_4, window_bounds = array<i64: 16, 128>}, {transform_indices = @transform_5, window_bounds = array<i64: 16, 128>}, {transform_indices = @transform_6, window_bounds = array<i64: 16, 128>}, {transform_indices = @transform_7, window_bounds = array<i64: 16, 128>}, {transform_indices = @transform_8, window_bounds = array<i64: 16, 128>}, {transform_indices = @transform_9, window_bounds = array<i64: 16, 128>}, {transform_indices = @transform_10, window_bounds = array<i64: 1, 1>}]} {
    %c0_i32 = arith.constant 0 : i32
    %0 = arith.cmpi eq, %arg1, %c0_i32 : i32
    %1 = arith.extui %0 : i1 to i32
    %c0_i32_0 = arith.constant 0 : i32
    %2 = arith.cmpi ne, %1, %c0_i32_0 : i32
    scf.if %2 {
      %cst_26 = arith.constant 0.000000e+00 : f32
      %35 = vector.broadcast %cst_26 : f32 to vector<16x128xf32>
      %c0_27 = arith.constant 0 : index
      %c0_28 = arith.constant 0 : index
      %36 = vector.load %arg13[%c0_27, %c0_28] : memref<16x128xf32, #tpu.memory_space<vmem>>, vector<16x128xf32>
      tpu.vector_store %arg13[%c0_27, %c0_28], %35 {strides = array<i32>} : memref<16x128xf32, #tpu.memory_space<vmem>>, vector<16x128xf32>,
    } else {
    }
    %cst = arith.constant 0.000000e+00 : f32
    %3 = vector.broadcast %cst : f32 to vector<16x128xf32>
    %c0 = arith.constant 0 : index
    %c0_1 = arith.constant 0 : index
    %4 = vector.load %arg2[%c0, %c0_1] : memref<16x128xf32, #tpu.memory_space<vmem>>, vector<16x128xf32>
    %c0_2 = arith.constant 0 : index
    %c0_3 = arith.constant 0 : index
    %5 = vector.load %arg7[%c0_2, %c0_3] : memref<16x128xf32, #tpu.memory_space<vmem>>, vector<16x128xf32>
    %6 = arith.subf %4, %5 : vector<16x128xf32>
    %7 = arith.mulf %6, %6 : vector<16x128xf32>
    %8 = arith.addf %3, %7 : vector<16x128xf32>
    %c0_4 = arith.constant 0 : index
    %c0_5 = arith.constant 0 : index
    %9 = vector.load %arg3[%c0_4, %c0_5] : memref<16x128xf32, #tpu.memory_space<vmem>>, vector<16x128xf32>
    %c0_6 = arith.constant 0 : index
    %c0_7 = arith.constant 0 : index
    %10 = vector.load %arg8[%c0_6, %c0_7] : memref<16x128xf32, #tpu.memory_space<vmem>>, vector<16x128xf32>
    %11 = arith.subf %9, %10 : vector<16x128xf32>
    %12 = arith.mulf %11, %11 : vector<16x128xf32>
    %13 = arith.addf %8, %12 : vector<16x128xf32>
    %c0_8 = arith.constant 0 : index
    %c0_9 = arith.constant 0 : index
    %14 = vector.load %arg4[%c0_8, %c0_9] : memref<16x128xf32, #tpu.memory_space<vmem>>, vector<16x128xf32>
    %c0_10 = arith.constant 0 : index
    %c0_11 = arith.constant 0 : index
    %15 = vector.load %arg9[%c0_10, %c0_11] : memref<16x128xf32, #tpu.memory_space<vmem>>, vector<16x128xf32>
    %16 = arith.subf %14, %15 : vector<16x128xf32>
    %17 = arith.mulf %16, %16 : vector<16x128xf32>
    %18 = arith.addf %13, %17 : vector<16x128xf32>
    %c0_12 = arith.constant 0 : index
    %c0_13 = arith.constant 0 : index
    %19 = vector.load %arg5[%c0_12, %c0_13] : memref<16x128xf32, #tpu.memory_space<vmem>>, vector<16x128xf32>
    %c0_14 = arith.constant 0 : index
    %c0_15 = arith.constant 0 : index
    %20 = vector.load %arg10[%c0_14, %c0_15] : memref<16x128xf32, #tpu.memory_space<vmem>>, vector<16x128xf32>
    %21 = arith.subf %19, %20 : vector<16x128xf32>
    %22 = arith.mulf %21, %21 : vector<16x128xf32>
    %23 = arith.addf %18, %22 : vector<16x128xf32>
    %c0_16 = arith.constant 0 : index
    %c0_17 = arith.constant 0 : index
    %24 = vector.load %arg6[%c0_16, %c0_17] : memref<16x128xf32, #tpu.memory_space<vmem>>, vector<16x128xf32>
    %c0_18 = arith.constant 0 : index
    %c0_19 = arith.constant 0 : index
    %25 = vector.load %arg11[%c0_18, %c0_19] : memref<16x128xf32, #tpu.memory_space<vmem>>, vector<16x128xf32>
    %26 = arith.subf %24, %25 : vector<16x128xf32>
    %27 = arith.mulf %26, %26 : vector<16x128xf32>
    %28 = arith.addf %23, %27 : vector<16x128xf32>
    %c0_20 = arith.constant 0 : index
    %c0_21 = arith.constant 0 : index
    %29 = vector.load %arg13[%c0_20, %c0_21] : memref<16x128xf32, #tpu.memory_space<vmem>>, vector<16x128xf32>
    %30 = arith.addf %29, %28 : vector<16x128xf32>
    %c0_22 = arith.constant 0 : index
    %c0_23 = arith.constant 0 : index
    %31 = vector.load %arg13[%c0_22, %c0_23] : memref<16x128xf32, #tpu.memory_space<vmem>>, vector<16x128xf32>
    tpu.vector_store %arg13[%c0_22, %c0_23], %30 {strides = array<i32>} : memref<16x128xf32, #tpu.memory_space<vmem>>, vector<16x128xf32>,
    %c0_i32_24 = arith.constant 0 : i32
    %32 = arith.cmpi eq, %arg1, %c0_i32_24 : i32
    %33 = arith.extui %32 : i1 to i32
    %c0_i32_25 = arith.constant 0 : i32
    %34 = arith.cmpi ne, %33, %c0_i32_25 : i32
    scf.if %34 {
      %c0_26 = arith.constant 0 : index
      %c0_27 = arith.constant 0 : index
      %35 = vector.load %arg13[%c0_26, %c0_27] : memref<16x128xf32, #tpu.memory_space<vmem>>, vector<16x128xf32>
      %36 = vector.shape_cast %35 : vector<16x128xf32> to vector<1x16x128xf32>
      %cst_28 = arith.constant dense<0.000000e+00> : vector<1xf32>
      %37 = vector.multi_reduction <add>, %36, %cst_28 [1, 2] : vector<1x16x128xf32> to vector<1xf32>
      %38 = vector.shape_cast %37 : vector<1xf32> to vector<1x1x1xf32>
      %39 = vector.extract %38[0, 0, 0] : f32 from vector<1x1x1xf32>
      %c0_29 = arith.constant 0 : index
      %c0_30 = arith.constant 0 : index
      %40 = memref.load %arg12[%c0_29, %c0_30] : memref<1x1xf32, #tpu.memory_space<smem>>
      memref.store %39, %arg12[%c0_29, %c0_30] : memref<1x1xf32, #tpu.memory_space<smem>>
    } else {
    }
    return
  }
  func.func @transform_0(%arg0: i32, %arg1: i32) -> (i32, i32) {
    %c1_i32 = arith.constant 1 : i32
    %0 = arith.muli %arg0, %c1_i32 : i32
    %1 = arith.addi %0, %arg1 : i32
    %c0_i32 = arith.constant 0 : i32
    %c0_i32_0 = arith.constant 0 : i32
    return %1, %c0_i32 : i32, i32
  }
  func.func @transform_1(%arg0: i32, %arg1: i32) -> (i32, i32) {
    %c1_i32 = arith.constant 1 : i32
    %0 = arith.muli %arg0, %c1_i32 : i32
    %1 = arith.addi %0, %arg1 : i32
    %c0_i32 = arith.constant 0 : i32
    %c0_i32_0 = arith.constant 0 : i32
    return %1, %c0_i32 : i32, i32
  }
  func.func @transform_2(%arg0: i32, %arg1: i32) -> (i32, i32) {
    %c1_i32 = arith.constant 1 : i32
    %0 = arith.muli %arg0, %c1_i32 : i32
    %1 = arith.addi %0, %arg1 : i32
    %c0_i32 = arith.constant 0 : i32
    %c0_i32_0 = arith.constant 0 : i32
    return %1, %c0_i32 : i32, i32
  }
  func.func @transform_3(%arg0: i32, %arg1: i32) -> (i32, i32) {
    %c1_i32 = arith.constant 1 : i32
    %0 = arith.muli %arg0, %c1_i32 : i32
    %1 = arith.addi %0, %arg1 : i32
    %c0_i32 = arith.constant 0 : i32
    %c0_i32_0 = arith.constant 0 : i32
    return %1, %c0_i32 : i32, i32
  }
  func.func @transform_4(%arg0: i32, %arg1: i32) -> (i32, i32) {
    %c1_i32 = arith.constant 1 : i32
    %0 = arith.muli %arg0, %c1_i32 : i32
    %1 = arith.addi %0, %arg1 : i32
    %c0_i32 = arith.constant 0 : i32
    %c0_i32_0 = arith.constant 0 : i32
    return %1, %c0_i32 : i32, i32
  }
  func.func @transform_5(%arg0: i32, %arg1: i32) -> (i32, i32) {
    %c1_i32 = arith.constant 1 : i32
    %0 = arith.muli %arg0, %c1_i32 : i32
    %1 = arith.addi %0, %arg1 : i32
    %c0_i32 = arith.constant 0 : i32
    %c0_i32_0 = arith.constant 0 : i32
    return %1, %c0_i32 : i32, i32
  }
  func.func @transform_6(%arg0: i32, %arg1: i32) -> (i32, i32) {
    %c1_i32 = arith.constant 1 : i32
    %0 = arith.muli %arg0, %c1_i32 : i32
    %1 = arith.addi %0, %arg1 : i32
    %c0_i32 = arith.constant 0 : i32
    %c0_i32_0 = arith.constant 0 : i32
    return %1, %c0_i32 : i32, i32
  }
  func.func @transform_7(%arg0: i32, %arg1: i32) -> (i32, i32) {
    %c1_i32 = arith.constant 1 : i32
    %0 = arith.muli %arg0, %c1_i32 : i32
    %1 = arith.addi %0, %arg1 : i32
    %c0_i32 = arith.constant 0 : i32
    %c0_i32_0 = arith.constant 0 : i32
    return %1, %c0_i32 : i32, i32
  }
  func.func @transform_8(%arg0: i32, %arg1: i32) -> (i32, i32) {
    %c1_i32 = arith.constant 1 : i32
    %0 = arith.muli %arg0, %c1_i32 : i32
    %1 = arith.addi %0, %arg1 : i32
    %c0_i32 = arith.constant 0 : i32
    %c0_i32_0 = arith.constant 0 : i32
    return %1, %c0_i32 : i32, i32
  }
  func.func @transform_9(%arg0: i32, %arg1: i32) -> (i32, i32) {
    %c1_i32 = arith.constant 1 : i32
    %0 = arith.muli %arg0, %c1_i32 : i32
    %1 = arith.addi %0, %arg1 : i32
    %c0_i32 = arith.constant 0 : i32
    %c0_i32_0 = arith.constant 0 : i32
    return %1, %c0_i32 : i32, i32
  }
  func.func @transform_10(%arg0: i32, %arg1: i32) -> (i32, i32) {
    %c0_i32 = arith.constant 0 : i32
    %c0_i32_0 = arith.constant 0 : i32
    return %arg0, %c0_i32 : i32, i32
  }
}

</mosaic_0001>

<llo_original>
// kernel: tpu_custom_call.1
$region0: #{tpu_custom_call.1}
  #allocation0 [shape = 'u32[]', space=smem, size = 0x4, offset = 0x4, fixed_abs, tag = 'smem constant byte address 0x4 - core index']
  #allocation1 [shape = 'u32[144,128]{1,0:T(1,128)}', space=vmem, size = 0x12000, scoped, tag = 'internal scratch']
  #allocation2 [shape = 'f32[16,128]{1,0:T(8,128)}', space=vmem, size = 0x2000, scoped, tag = 'scratch operand']
  %s0 = inlined_call_operand.hbm [shape: f32[16,128], index: 0, kind: input, shape index: {}]
  %s1 = inlined_call_operand.hbm [shape: f32[16,128], index: 1, kind: input, shape index: {}]
  %s2 = inlined_call_operand.hbm [shape: f32[16,128], index: 2, kind: input, shape index: {}]
  %s3 = inlined_call_operand.hbm [shape: f32[16,128], index: 3, kind: input, shape index: {}]
  %s4 = inlined_call_operand.hbm [shape: f32[16,128], index: 4, kind: input, shape index: {}]
  %s5 = inlined_call_operand.vmem [shape: f32[16,128], index: 5, kind: input, shape index: {}]
  %s6 = inlined_call_operand.hbm [shape: f32[16,128], index: 6, kind: input, shape index: {}]
  %s7 = inlined_call_operand.hbm [shape: f32[16,128], index: 7, kind: input, shape index: {}]
  %s8 = inlined_call_operand.hbm [shape: f32[16,128], index: 8, kind: input, shape index: {}]
  %s9 = inlined_call_operand.vmem [shape: f32[16,128], index: 9, kind: input, shape index: {}]
  %s10 = inlined_call_operand.hbm [shape: f32[1,1], index: 10, kind: output, shape index: {}]
  %s11 = sld [smem:[#allocation0]]
  $region90: #{tpu_custom_call.1} parent=0
    _
  %s13 = ssub.s32 1, %s11
  %s14 = scalar_select 0, %s13, %s11
  $region1: #{tpu_custom_call.1} parent=0
    #allocation3 [shape = 'u8[8192]{0}', space=vmem, size = 0x2000, scoped, tag = 'input window, operand 0, single buffered']
    #allocation4 [shape = 's32[1]{0}', space=sflag, size = 0x4, scoped, tag = 'scoped memory for tpu_custom_call.1']
    #allocation5 [shape = 's32[1]{0}', space=sflag, size = 0x4, scoped, tag = 'scoped memory for tpu_custom_call.1']
    #allocation6 [shape = 'u8[8192]{0}', space=vmem, size = 0x2000, scoped, tag = 'input window, operand 1, single buffered']
    #allocation7 [shape = 's32[1]{0}', space=sflag, size = 0x4, scoped, tag = 'scoped memory for tpu_custom_call.1']
    #allocation8 [shape = 'u8[8192]{0}', space=vmem, size = 0x2000, scoped, tag = 'input window, operand 2, single buffered']
    #allocation9 [shape = 'u8[8192]{0}', space=vmem, size = 0x2000, scoped, tag = 'input window, operand 3, single buffered']
    #allocation10 [shape = 's32[1]{0}', space=sflag, size = 0x4, scoped, tag = 'scoped memory for tpu_custom_call.1']
    #allocation11 [shape = 'u8[8192]{0}', space=vmem, size = 0x2000, scoped, tag = 'input window, operand 4, single buffered']
    #allocation12 [shape = 'u8[8192]{0}', space=vmem, size = 0x2000, scoped, tag = 'input window, operand 6, single buffered']
    #allocation13 [shape = 's32[1]{0}', space=sflag, size = 0x4, scoped, tag = 'scoped memory for tpu_custom_call.1']
    #allocation14 [shape = 'u8[8192]{0}', space=vmem, size = 0x2000, scoped, tag = 'input window, operand 7, single buffered']
    #allocation15 [shape = 'u8[8192]{0}', space=vmem, size = 0x2000, scoped, tag = 'input window, operand 8, single buffered']
    #allocation16 [shape = 's32[1]{0}', space=sflag, size = 0x4, scoped, tag = 'scoped memory for tpu_custom_call.1']
    #allocation17 [shape = 'u8[512]{0}', space=smem, size = 0x200, scoped, tag = 'output window, operand 0, single buffered']
    %15 = vsyncpa [#allocation4], 0
    %16 = vsyncpa [#allocation7], 0
    %17 = vsyncpa [#allocation10], 0
    %18 = vsyncpa [#allocation13], 0
    %19 = vsyncpa [#allocation16], 0
    %20 = vsyncpa [#allocation5], 0
    // Predicated region
    $region2: #{tpu_custom_call.1} parent=1 // pred_check
      _
    $region3: #{tpu_custom_call.1} parent=1 // pred_check_branch
      %22 = sbr.rel (0) target = $region5
    $region4: #{tpu_custom_call.1} parent=1 // pred_region
      %s23 = sadd.s32 0, 0
      %s24 = smul.u32 2, %s23
      %s26 = ssub.s32 256, 256
      %27 = vsyncadd [#allocation4], %s26
      %s28 = smul.addr %s24, 128
      %s29 = scalar_lea.hbm %s0, %s28
      %s30 = sshll.u32 [#allocation3], 4
      %s31 = int_to_ptr.vmem [resolvable:$true] %s30
      %36 = dma.hbm_to_vmem [thread:$0]  %s29, 256, %s31, [#allocation4], 128, 128, 8
    $region5: #{tpu_custom_call.1} parent=1 // pred_fallthru
      _
    // Predicated region
    $region6: #{tpu_custom_call.1} parent=1 // pred_check
      _
    $region7: #{tpu_custom_call.1} parent=1 // pred_check_branch
      %38 = sbr.rel (0) target = $region9
    $region8: #{tpu_custom_call.1} parent=1 // pred_region
      %s39 = sadd.s32 0, 0
      %s40 = smul.u32 2, %s39
      %s42 = ssub.s32 256, 256
      %43 = vsyncadd [#allocation7], %s42
      %s44 = smul.addr %s40, 128
      %s45 = scalar_lea.hbm %s1, %s44
      %s46 = sshll.u32 [#allocation6], 4
      %s47 = int_to_ptr.vmem [resolvable:$true] %s46
      %52 = dma.hbm_to_vmem [thread:$0]  %s45, 256, %s47, [#allocation7], 128, 128, 8
    $region9: #{tpu_custom_call.1} parent=1 // pred_fallthru
      _
    // Predicated region
    $region10: #{tpu_custom_call.1} parent=1 // pred_check
      _
    $region11: #{tpu_custom_call.1} parent=1 // pred_check_branch
      %54 = sbr.rel (0) target = $region13
    $region12: #{tpu_custom_call.1} parent=1 // pred_region
      %s55 = sadd.s32 0, 0
      %s56 = smul.u32 2, %s55
      %s58 = ssub.s32 256, 256
      %59 = vsyncadd [#allocation7], %s58
      %s60 = smul.addr %s56, 128
      %s61 = scalar_lea.hbm %s2, %s60
      %s62 = sshll.u32 [#allocation8], 4
      %s63 = int_to_ptr.vmem [resolvable:$true] %s62
      %68 = dma.hbm_to_vmem [thread:$0]  %s61, 256, %s63, [#allocation7], 128, 128, 8
    $region13: #{tpu_custom_call.1} parent=1 // pred_fallthru
      _
    // Predicated region
    $region14: #{tpu_custom_call.1} parent=1 // pred_check
      _
    $region15: #{tpu_custom_call.1} parent=1 // pred_check_branch
      %70 = sbr.rel (0) target = $region17
    $region16: #{tpu_custom_call.1} parent=1 // pred_region
      %s71 = sadd.s32 0, 0
      %s72 = smul.u32 2, %s71
      %s74 = ssub.s32 256, 256
      %75 = vsyncadd [#allocation10], %s74
      %s76 = smul.addr %s72, 128
      %s77 = scalar_lea.hbm %s3, %s76
      %s78 = sshll.u32 [#allocation9], 4
      %s79 = int_to_ptr.vmem [resolvable:$true] %s78
      %84 = dma.hbm_to_vmem [thread:$0]  %s77, 256, %s79, [#allocation10], 128, 128, 8
    $region17: #{tpu_custom_call.1} parent=1 // pred_fallthru
      _
    // Predicated region
    $region18: #{tpu_custom_call.1} parent=1 // pred_check
      _
    $region19: #{tpu_custom_call.1} parent=1 // pred_check_branch
      %86 = sbr.rel (0) target = $region21
    $region20: #{tpu_custom_call.1} parent=1 // pred_region
      %s87 = sadd.s32 0, 0
      %s88 = smul.u32 2, %s87
      %s90 = ssub.s32 256, 256
      %91 = vsyncadd [#allocation10], %s90
      %s92 = smul.addr %s88, 128
      %s93 = scalar_lea.hbm %s4, %s92
      %s94 = sshll.u32 [#allocation11], 4
      %s95 = int_to_ptr.vmem [resolvable:$true] %s94
      %100 = dma.hbm_to_vmem [thread:$0]  %s93, 256, %s95, [#allocation10], 128, 128, 8
    $region21: #{tpu_custom_call.1} parent=1 // pred_fallthru
      _
    // Predicated region
    $region22: #{tpu_custom_call.1} parent=1 // pred_check
      _
    $region23: #{tpu_custom_call.1} parent=1 // pred_check_branch
      %102 = sbr.rel (0) target = $region25
    $region24: #{tpu_custom_call.1} parent=1 // pred_region
      %s103 = sadd.s32 0, 0
      %s104 = smul.u32 2, %s103
      %p105 = scmp.lt.s32.totalorder %s104, 1
      %s106 = scalar_select %p105, %s104, 1
      %s107 = smul.addr %s106, 8
      %s108 = scalar_lea.vmem %s5, %s107
      %s109 = sadd.s32 0, 0
      %s110 = smul.u32 2, %s109
    $region25: #{tpu_custom_call.1} parent=1 // pred_fallthru
      _
    // Predicated region
    $region26: #{tpu_custom_call.1} parent=1 // pred_check
      _
    $region27: #{tpu_custom_call.1} parent=1 // pred_check_branch
      %112 = sbr.rel (0) target = $region29
    $region28: #{tpu_custom_call.1} parent=1 // pred_region
      %s113 = sadd.s32 0, 0
      %s114 = smul.u32 2, %s113
      %s116 = ssub.s32 256, 256
      %117 = vsyncadd [#allocation13], %s116
      %s118 = smul.addr %s114, 128
      %s119 = scalar_lea.hbm %s6, %s118
      %s120 = sshll.u32 [#allocation12], 4
      %s121 = int_to_ptr.vmem [resolvable:$true] %s120
      %126 = dma.hbm_to_vmem [thread:$0]  %s119, 256, %s121, [#allocation13], 128, 128, 8
    $region29: #{tpu_custom_call.1} parent=1 // pred_fallthru
      _
    // Predicated region
    $region30: #{tpu_custom_call.1} parent=1 // pred_check
      _
    $region31: #{tpu_custom_call.1} parent=1 // pred_check_branch
      %128 = sbr.rel (0) target = $region33
    $region32: #{tpu_custom_call.1} parent=1 // pred_region
      %s129 = sadd.s32 0, 0
      %s130 = smul.u32 2, %s129
      %s132 = ssub.s32 256, 256
      %133 = vsyncadd [#allocation13], %s132
      %s134 = smul.addr %s130, 128
      %s135 = scalar_lea.hbm %s7, %s134
      %s136 = sshll.u32 [#allocation14], 4
      %s137 = int_to_ptr.vmem [resolvable:$true] %s136
      %142 = dma.hbm_to_vmem [thread:$0]  %s135, 256, %s137, [#allocation13], 128, 128, 8
    $region33: #{tpu_custom_call.1} parent=1 // pred_fallthru
      _
    // Predicated region
    $region34: #{tpu_custom_call.1} parent=1 // pred_check
      _
    $region35: #{tpu_custom_call.1} parent=1 // pred_check_branch
      %144 = sbr.rel (0) target = $region37
    $region36: #{tpu_custom_call.1} parent=1 // pred_region
      %s145 = sadd.s32 0, 0
      %s146 = smul.u32 2, %s145
      %s148 = ssub.s32 256, 256
      %149 = vsyncadd [#allocation16], %s148
      %s150 = smul.addr %s146, 128
      %s151 = scalar_lea.hbm %s8, %s150
      %s152 = sshll.u32 [#allocation15], 4
      %s153 = int_to_ptr.vmem [resolvable:$true] %s152
      %158 = dma.hbm_to_vmem [thread:$0]  %s151, 256, %s153, [#allocation16], 128, 128, 8
    $region37: #{tpu_custom_call.1} parent=1 // pred_fallthru
      _
    // Predicated region
    $region38: #{tpu_custom_call.1} parent=1 // pred_check
      _
    $region39: #{tpu_custom_call.1} parent=1 // pred_check_branch
      %160 = sbr.rel (0) target = $region41
    $region40: #{tpu_custom_call.1} parent=1 // pred_region
      %s161 = sadd.s32 0, 0
      %s162 = smul.u32 2, %s161
      %p163 = scmp.lt.s32.totalorder %s162, 1
      %s164 = scalar_select %p163, %s162, 1
      %s165 = smul.addr %s164, 8
      %s166 = scalar_lea.vmem %s9, %s165
      %s167 = sadd.s32 0, 0
      %s168 = smul.u32 2, %s167
    $region41: #{tpu_custom_call.1} parent=1 // pred_fallthru
      _
    // Predicated region
    $region42: #{tpu_custom_call.1} parent=1 // pred_check
      _
    $region43: #{tpu_custom_call.1} parent=1 // pred_check_branch
      %170 = sbr.rel (0) target = $region45
    $region44: #{tpu_custom_call.1} parent=1 // pred_region
      %171 = dma.done [#allocation4], 256
    $region45: #{tpu_custom_call.1} parent=1 // pred_fallthru
      _
    // Predicated region
    $region46: #{tpu_custom_call.1} parent=1 // pred_check
      _
    $region47: #{tpu_custom_call.1} parent=1 // pred_check_branch
      %173 = sbr.rel (0) target = $region49
    $region48: #{tpu_custom_call.1} parent=1 // pred_region
      %174 = dma.done [#allocation7], 256
    $region49: #{tpu_custom_call.1} parent=1 // pred_fallthru
      _
    // Predicated region
    $region50: #{tpu_custom_call.1} parent=1 // pred_check
      _
    $region51: #{tpu_custom_call.1} parent=1 // pred_check_branch
      %176 = sbr.rel (0) target = $region53
    $region52: #{tpu_custom_call.1} parent=1 // pred_region
      %177 = dma.done [#allocation7], 256
    $region53: #{tpu_custom_call.1} parent=1 // pred_fallthru
      _
    // Predicated region
    $region54: #{tpu_custom_call.1} parent=1 // pred_check
      _
    $region55: #{tpu_custom_call.1} parent=1 // pred_check_branch
      %179 = sbr.rel (0) target = $region57
    $region56: #{tpu_custom_call.1} parent=1 // pred_region
      %180 = dma.done [#allocation10], 256
    $region57: #{tpu_custom_call.1} parent=1 // pred_fallthru
      _
    // Predicated region
    $region58: #{tpu_custom_call.1} parent=1 // pred_check
      _
    $region59: #{tpu_custom_call.1} parent=1 // pred_check_branch
      %182 = sbr.rel (0) target = $region61
    $region60: #{tpu_custom_call.1} parent=1 // pred_region
      %183 = dma.done [#allocation10], 256
    $region61: #{tpu_custom_call.1} parent=1 // pred_fallthru
      _
    // Predicated region
    $region62: #{tpu_custom_call.1} parent=1 // pred_check
      _
    $region63: #{tpu_custom_call.1} parent=1 // pred_check_branch
      %185 = sbr.rel (0) target = $region65
    $region64: #{tpu_custom_call.1} parent=1 // pred_region
      %186 = dma.done [#allocation13], 256
    $region65: #{tpu_custom_call.1} parent=1 // pred_fallthru
      _
    // Predicated region
    $region66: #{tpu_custom_call.1} parent=1 // pred_check
      _
    $region67: #{tpu_custom_call.1} parent=1 // pred_check_branch
      %188 = sbr.rel (0) target = $region69
    $region68: #{tpu_custom_call.1} parent=1 // pred_region
      %189 = dma.done [#allocation13], 256
    $region69: #{tpu_custom_call.1} parent=1 // pred_fallthru
      _
    // Predicated region
    $region70: #{tpu_custom_call.1} parent=1 // pred_check
      _
    $region71: #{tpu_custom_call.1} parent=1 // pred_check_branch
      %191 = sbr.rel (0) target = $region73
    $region72: #{tpu_custom_call.1} parent=1 // pred_region
      %192 = dma.done [#allocation16], 256
    $region73: #{tpu_custom_call.1} parent=1 // pred_fallthru
      _
    %s193 = sadd.s32 0, 0
    %s194 = smul.u32 2, %s193
    %p195 = scmp.lt.s32.totalorder %s194, 1
    %s196 = scalar_select %p195, %s194, 1
    %s197 = smul.addr %s196, 8
    %s198 = scalar_lea.vmem %s5, %s197
    %s199 = sadd.s32 0, 0
    %s200 = smul.u32 2, %s199
    %p201 = scmp.lt.s32.totalorder %s200, 1
    %s202 = scalar_select %p201, %s200, 1
    %s203 = smul.addr %s202, 8
    %s204 = scalar_lea.vmem %s9, %s203
    %s205 = sadd.s32 0, 0
    %s206 = smul.u32 2, %s205
    %s207 = sadd.s32 0, 0
    %s208 = smul.u32 2, %s207
    %s209 = sadd.s32 0, 0
    %s210 = smul.u32 2, %s209
    %s211 = sadd.s32 0, 0
    %s212 = smul.u32 2, %s211
    %s213 = sadd.s32 0, 0
    %s214 = smul.u32 2, %s213
    %s215 = sadd.s32 0, 0
    %s216 = smul.u32 2, %s215
    %p217 = scmp.lt.s32.totalorder %s216, 1
    %s218 = scalar_select %p217, %s216, 1
    %s219 = smul.addr %s218, 8
    %s220 = scalar_lea.vmem %s5, %s219
    %s221 = sadd.s32 0, 0
    %s222 = smul.u32 2, %s221
    %s223 = sadd.s32 0, 0
    %s224 = smul.u32 2, %s223
    %s225 = sadd.s32 0, 0
    %s226 = smul.u32 2, %s225
    %s227 = sadd.s32 0, 0
    %s228 = smul.u32 2, %s227
    %s229 = sadd.s32 0, 0
    %s230 = smul.u32 2, %s229
    %p231 = scmp.lt.s32.totalorder %s230, 1
    %s232 = scalar_select %p231, %s230, 1
    %s233 = smul.addr %s232, 8
    %s234 = scalar_lea.vmem %s9, %s233
    %s235 = sadd.s32 0, 0
    %s236 = smul.u32 2, %s235
    %p237 = scmp.eq.s32.totalorder 0, 0
    // Predicated region
    $region74: #{tpu_custom_call.1} parent=1 // pred_check
      %p238 = pneg %p237
    $region75: #{tpu_custom_call.1} parent=1 // pred_check_branch
      %240 = sbr.rel (%p238) target = $region77
    $region76: #{tpu_custom_call.1} parent=1 // pred_region
      %241 = vst [vmem:[#allocation2] sm:$0xff] 0.0
      %242 = vst [vmem:[#allocation2 + $0x8] sm:$0xff] 0.0
    $region77: #{tpu_custom_call.1} parent=1 // pred_fallthru
      _
    %v243 = vld [vmem:[#allocation3] sm:$0xff]
    %v244 = vld [vmem:[#allocation3 + $0x8] sm:$0xff]
    %v245 = vld [vmem:[%s220] sm:$0xff]
    %v246 = vld [vmem:[%s220 + $0x8] sm:$0xff]
    %v247 = vsub.f32 %v243, %v245
    %v248 = vsub.f32 %v244, %v246
    %v249 = vmul.f32 %v247, %v247
    %v250 = vmul.f32 %v248, %v248
    %v251 = vadd.f32 %v249, 0.0
    %v252 = vadd.f32 %v250, 0.0
    %v253 = vld [vmem:[#allocation6] sm:$0xff]
    %v254 = vld [vmem:[#allocation6 + $0x8] sm:$0xff]
    %v255 = vld [vmem:[#allocation12] sm:$0xff]
    %v256 = vld [vmem:[#allocation12 + $0x8] sm:$0xff]
    %v257 = vsub.f32 %v253, %v255
    %v258 = vsub.f32 %v254, %v256
    %v259 = vmul.f32 %v257, %v257
    %v260 = vmul.f32 %v258, %v258
    %v261 = vadd.f32 %v251, %v259
    %v262 = vadd.f32 %v252, %v260
    %v263 = vld [vmem:[#allocation8] sm:$0xff]
    %v264 = vld [vmem:[#allocation8 + $0x8] sm:$0xff]
    %v265 = vld [vmem:[#allocation14] sm:$0xff]
    %v266 = vld [vmem:[#allocation14 + $0x8] sm:$0xff]
    %v267 = vsub.f32 %v263, %v265
    %v268 = vsub.f32 %v264, %v266
    %v269 = vmul.f32 %v267, %v267
    %v270 = vmul.f32 %v268, %v268
    %v271 = vadd.f32 %v261, %v269
    %v272 = vadd.f32 %v262, %v270
    %v273 = vld [vmem:[#allocation9] sm:$0xff]
    %v274 = vld [vmem:[#allocation9 + $0x8] sm:$0xff]
    %v275 = vld [vmem:[#allocation15] sm:$0xff]
    %v276 = vld [vmem:[#allocation15 + $0x8] sm:$0xff]
    %v277 = vsub.f32 %v273, %v275
    %v278 = vsub.f32 %v274, %v276
    %v279 = vmul.f32 %v277, %v277
    %v280 = vmul.f32 %v278, %v278
    %v281 = vadd.f32 %v271, %v279
    %v282 = vadd.f32 %v272, %v280
    %v283 = vld [vmem:[#allocation11] sm:$0xff]
    %v284 = vld [vmem:[#allocation11 + $0x8] sm:$0xff]
    %v285 = vld [vmem:[%s234] sm:$0xff]
    %v286 = vld [vmem:[%s234 + $0x8] sm:$0xff]
    %v287 = vsub.f32 %v283, %v285
    %v288 = vsub.f32 %v284, %v286
    %v289 = vmul.f32 %v287, %v287
    %v290 = vmul.f32 %v288, %v288
    %v291 = vadd.f32 %v281, %v289
    %v292 = vadd.f32 %v282, %v290
    %v293 = vld [vmem:[#allocation2] sm:$0xff]
    %v294 = vld [vmem:[#allocation2 + $0x8] sm:$0xff]
    %v295 = vadd.f32 %v293, %v291
    %v296 = vadd.f32 %v294, %v292
    %297 = vst [vmem:[#allocation2] sm:$0xff] %v295
    %298 = vst [vmem:[#allocation2 + $0x8] sm:$0xff] %v296
    // Predicated region
    $region78: #{tpu_custom_call.1} parent=1 // pred_check
      %p299 = pneg %p237
    $region79: #{tpu_custom_call.1} parent=1 // pred_check_branch
      %301 = sbr.rel (%p299) target = $region81
    $region80: #{tpu_custom_call.1} parent=1 // pred_region
      %v302 = vld [vmem:[#allocation2] sm:$0xff]
      %v303 = vld [vmem:[#allocation2 + $0x8] sm:$0xff]
      %v304 = vadd.f32 %v302, %v303
      %305 = vadd.xlane.f32.xlu0 %v304
      %v306 = vpop.xlane.xlu0 %305
      %v307 = vrot.slane %v306, 4
      %v308 = vadd.f32 %v306, %v307
      %v309 = vrot.slane %v308, 2
      %v310 = vadd.f32 %v308, %v309
      %v311 = vrot.slane %v310, 1
      %v312 = vadd.f32 %v310, %v311
      %s313 = vtos %v312
      %s314 = scalar_lea.smem [#allocation17], 0
      %315 = sst [smem:[%s314]] %s313
    $region81: #{tpu_custom_call.1} parent=1 // pred_fallthru
      _
    // Predicated region
    $region82: #{tpu_custom_call.1} parent=1 // pred_check
      _
    $region83: #{tpu_custom_call.1} parent=1 // pred_check_branch
      %317 = sbr.rel (0) target = $region85
    $region84: #{tpu_custom_call.1} parent=1 // pred_region
      %s319 = ssub.s32 16, 16
      %320 = vsyncadd [#allocation5], %s319
      %323 = dma.smem_to_hbm [#allocation17], 16, %s10, [#allocation5]
    $region85: #{tpu_custom_call.1} parent=1 // pred_fallthru
      _
    // Predicated region
    $region86: #{tpu_custom_call.1} parent=1 // pred_check
      _
    $region87: #{tpu_custom_call.1} parent=1 // pred_check_branch
      %325 = sbr.rel (0) target = $region89
    $region88: #{tpu_custom_call.1} parent=1 // pred_region
      %326 = dma.done [#allocation5], 16
    $region89: #{tpu_custom_call.1} parent=1 // pred_fallthru
      _
    %327 = sfence
    %328 = vsyncpa [#allocation4], 1
    %329 = vsyncpa [#allocation7], 1
    %330 = vsyncpa [#allocation10], 1
    %331 = vsyncpa [#allocation13], 1
    %332 = vsyncpa [#allocation16], 1
    %333 = vsyncpa [#allocation5], 1

</llo_original>
